<compile_context>
chip_gen: v5e
topology: v5e:2x2
jax: 0.10.0
libtpu: 0.0.40
codegen_flags: <defaults>
</compile_context>

<pallas_src>
import functools

import jax
import jax.numpy as jnp
import numpy as np
from jax.experimental import pallas as pl
from jax.experimental.pallas import tpu as pltpu

BN_EPS = 1e-5
LANE = 128
SUBLANE = 8
MAX_BATCH_TILE = 256   # rows per grid step; conservative for v7x (64 MiB VMEM/TC)


def _round_up(x, m):
    return ((x + m - 1) // m) * m


# --------------------------------------------------------------------------- #
# Fused Pallas kernel: all domains in one invocation.
# --------------------------------------------------------------------------- #
def _gdamf_fused_kernel(x_ref, wfc0_ref, wp0_ref, vec0_ref,
                        wfc_ns_ref, wpf_ns_ref, wpy_ns_ref, vec_ns_ref,
                        feat_ref, pred_ref, *, num_ns, Hp, Lp):
    # vec slabs (8, Wmax): row 0 = b_fc, row 1 = bn_scale, row 2 = bn_shift,
    #                      row 3 = b_pred (remaining rows are zero padding).
    vec0 = vec0_ref[...]

    # ---- source domain: Linear -> ReLU -> (Dropout = id, eval) -> BN (eval affine)
    h = jnp.dot(x_ref[...], wfc0_ref[...], preferred_element_type=jnp.float32)
    h = jnp.maximum(h + vec0[0:1, :Hp], 0.0)
    feat = h * vec0[1:2, :Hp] + vec0[2:3, :Hp]
    pred = (jnp.dot(feat, wp0_ref[...], preferred_element_type=jnp.float32)
            + vec0[3:4, :Lp])

    # ---- non-source domains, fully unrolled; feature/pred never leave VMEM.
    for d in range(num_ns):
        vec_d = vec_ns_ref[d]
        h = jnp.dot(feat, wfc_ns_ref[d], preferred_element_type=jnp.float32)
        h = jnp.maximum(h + vec_d[0:1, :Hp], 0.0)
        feat = h * vec_d[1:2, :Hp] + vec_d[2:3, :Hp]
        # concat([feature, pred_prev]) @ W_pred  ==  split matmul
        p = jnp.dot(feat, wpf_ns_ref[d], preferred_element_type=jnp.float32)
        p = p + jnp.dot(pred, wpy_ns_ref[d], preferred_element_type=jnp.float32)
        pred = p + vec_d[3:4, :Lp]

    feat_ref[...] = feat            # lane-dense (Hp multiple of 128)
    pred_ref[...] = pred            # lane-dense (Lp multiple of 128)


# --------------------------------------------------------------------------- #
# Wrapper: pad/pack params, build batch grid, call the fused kernel.
# --------------------------------------------------------------------------- #
def _pad2(w, rows, cols):
    out = jnp.zeros((rows, cols), jnp.float32)
    return out.at[:w.shape[0], :w.shape[1]].set(w.astype(jnp.float32))


def _pack_vecs(vectors, width):
    """Pack 1-D vectors into rows 0..len-1 of an (8, width) zero slab."""
    slab = jnp.zeros((SUBLANE, width), jnp.float32)
    for r, v in enumerate(vectors):
        slab = slab.at[r, :v.shape[0]].set(v.astype(jnp.float32))
    return slab


@functools.partial(jax.jit, static_argnames=("domain",))
def gdamf_forward(params, x, domain):
    """Fused GDAMF forward (eval mode). Returns (feature[B,H], pred_y[B,L])."""
    if domain < 1:
        raise ValueError("domain must be >= 1")
    B, IN = x.shape
    H = params[0]["w_fc"].shape[1]
    L = params[0]["w_pred"].shape[1]
    INp = _round_up(IN, LANE)
    Hp = _round_up(H, LANE)
    Lp = _round_up(L, LANE)
    Wmax = max(Hp, Lp)
    num_ns = domain - 1
    n_stack = max(num_ns, 1)   # keep a dummy slot so shapes stay non-empty

    def bn_affine(p):
        scale = p["bn_gamma"] * jax.lax.rsqrt(p["bn_var"] + BN_EPS)
        shift = p["bn_beta"] - p["bn_mean"] * scale
        return scale, shift

    # ---- source-domain params (padded / packed)
    p0 = params[0]
    wfc0 = _pad2(p0["w_fc"], INp, Hp)
    wp0 = _pad2(p0["w_pred"], Hp, Lp)
    s0, sh0 = bn_affine(p0)
    vec0 = _pack_vecs([p0["b_fc"], s0, sh0, p0["b_pred"]], Wmax)

    # ---- non-source params, stacked along a leading "domain" axis
    wfc_ns = jnp.zeros((n_stack, Hp, Hp), jnp.float32)
    wpf_ns = jnp.zeros((n_stack, Hp, Lp), jnp.float32)
    wpy_ns = jnp.zeros((n_stack, Lp, Lp), jnp.float32)
    vec_ns = jnp.zeros((n_stack, SUBLANE, Wmax), jnp.float32)
    for d in range(num_ns):
        p = params[d + 1]
        s, sh = bn_affine(p)
        wfc_ns = wfc_ns.at[d].set(_pad2(p["w_fc"], Hp, Hp))
        wpf_ns = wpf_ns.at[d].set(_pad2(p["w_pred"][:H], Hp, Lp))
        wpy_ns = wpy_ns.at[d].set(_pad2(p["w_pred"][H:], Lp, Lp))
        vec_ns = vec_ns.at[d].set(_pack_vecs([p["b_fc"], s, sh, p["b_pred"]], Wmax))

    # ---- batch tiling (pad batch so the grid divides evenly)
    TB = MAX_BATCH_TILE if B >= MAX_BATCH_TILE else _round_up(B, SUBLANE)
    Bp = _round_up(B, TB)
    x_p = jnp.zeros((Bp, INp), jnp.float32).at[:B, :IN].set(x.astype(jnp.float32))
    grid = (Bp // TB,)

    kernel = functools.partial(_gdamf_fused_kernel, num_ns=num_ns, Hp=Hp, Lp=Lp)
    feat_p, pred_p = pl.pallas_call(
        kernel,
        out_shape=(jax.ShapeDtypeStruct((Bp, Hp), jnp.float32),
                   jax.ShapeDtypeStruct((Bp, Lp), jnp.float32)),
        grid=grid,
        in_specs=[
            pl.BlockSpec((TB, INp), lambda i: (i, 0)),              # x batch tile
            pl.BlockSpec((INp, Hp), lambda i: (0, 0)),              # source W_fc
            pl.BlockSpec((Hp, Lp), lambda i: (0, 0)),               # source W_pred
            pl.BlockSpec((SUBLANE, Wmax), lambda i: (0, 0)),        # source bias/BN slab
            pl.BlockSpec((n_stack, Hp, Hp), lambda i: (0, 0, 0)),   # stacked W_fc
            pl.BlockSpec((n_stack, Hp, Lp), lambda i: (0, 0, 0)),   # stacked W_pred[:H]
            pl.BlockSpec((n_stack, Lp, Lp), lambda i: (0, 0, 0)),   # stacked W_pred[H:]
            pl.BlockSpec((n_stack, SUBLANE, Wmax), lambda i: (0, 0, 0)),  # stacked slabs
        ],
        out_specs=(pl.BlockSpec((TB, Hp), lambda i: (i, 0)),
                   pl.BlockSpec((TB, Lp), lambda i: (i, 0))),
        compiler_params=pltpu.CompilerParams(
            dimension_semantics=("parallel",)),
    )(x_p, wfc0, wp0, vec0, wfc_ns, wpf_ns, wpy_ns, vec_ns)

    return feat_p[:B, :H], pred_p[:B, :L]


# --------------------------------------------------------------------------- #
# Parameter construction (deterministic, PyTorch-default-like uniform init).
# Linear weights are stored pre-transposed as (in_features, out_features).
# --------------------------------------------------------------------------- #
def _linear_init(key, fan_in, fan_out):
    kw, kb = jax.random.split(key)
    bound = 1.0 / np.sqrt(fan_in)
    w = jax.random.uniform(kw, (fan_in, fan_out), jnp.float32, -bound, bound)
    b = jax.random.uniform(kb, (fan_out,), jnp.float32, -bound, bound)
    return w, b


def make_gdamf_params(key, num_labels, num_domains, input_dim, hidden_dim):
    params = []
    for i in range(num_domains):
        key, k_fc, k_pred, k_bn = jax.random.split(key, 4)
        if i == 0:   # source MLP: Linear(input_dim, H); pred Linear(H, L)
            w_fc, b_fc = _linear_init(k_fc, input_dim, hidden_dim)
            w_p, b_p = _linear_init(k_pred, hidden_dim, num_labels)
        else:        # non-source MLP: Linear(H, H); pred Linear(H + L, L)
            w_fc, b_fc = _linear_init(k_fc, hidden_dim, hidden_dim)
            w_p, b_p = _linear_init(k_pred, hidden_dim + num_labels, num_labels)
        k1, k2, k3, k4 = jax.random.split(k_bn, 4)
        params.append(dict(
            w_fc=w_fc, b_fc=b_fc, w_pred=w_p, b_pred=b_p,
            # Non-trivial BN affine / running stats so the folded-affine path is
            # actually exercised (PyTorch defaults would be gamma=1, beta=mean=0, var=1).
            bn_gamma=jax.random.uniform(k1, (hidden_dim,), jnp.float32, 0.5, 1.5),
            bn_beta=0.1 * jax.random.normal(k2, (hidden_dim,), jnp.float32),
            bn_mean=0.1 * jax.random.normal(k3, (hidden_dim,), jnp.float32),
            bn_var=jax.random.uniform(k4, (hidden_dim,), jnp.float32, 0.5, 1.5),
        ))
    return params


# --------------------------------------------------------------------------- #
# Pure-JAX reference (same eval-mode semantics) for a sanity check.
# --------------------------------------------------------------------------- #
def _ref_forward(params, x, domain):
    feature, pred_y = None, None
    for i in range(domain):
        p = params[i]
        inp = x if i == 0 else feature
        h = jnp.maximum(inp @ p["w_fc"] + p["b_fc"], 0.0)
        feat = ((h - p["bn_mean"]) / jnp.sqrt(p["bn_var"] + BN_EPS)
                * p["bn_gamma"] + p["bn_beta"])
        if i == 0:
            pred = feat @ p["w_pred"] + p["b_pred"]
        else:
            cat = jnp.concatenate([feat, pred_y], axis=1)
            pred = cat @ p["w_pred"] + p["b_pred"]
        feature, pred_y = feat, pred
    return feature, pred_y


# --------------------------------------------------------------------------- #
if __name__ == "__main__":
    num_labels = 4
    num_domains = 3
    input_dim = 32     # int -> fully-connected branch of MLP
    hidden_dim = 32
    batch = 8
    domain = 3

    key = jax.random.PRNGKey(0)
    k_params, k_x = jax.random.split(key)
    params = make_gdamf_params(k_params, num_labels, num_domains, input_dim, hidden_dim)
    x = jax.random.normal(k_x, (batch, input_dim), jnp.float32)

    feature, pred_y = gdamf_forward(params, x, domain=domain)
    jax.block_until_ready((feature, pred_y))

    ref_feature, ref_pred = _ref_forward(params, x, domain)
    np.testing.assert_allclose(np.asarray(feature), np.asarray(ref_feature),
                               rtol=1e-4, atol=1e-5)
    np.testing.assert_allclose(np.asarray(pred_y), np.asarray(ref_pred),
                               rtol=1e-4, atol=1e-5)

    assert feature.shape == (batch, hidden_dim)
    assert pred_y.shape == (batch, num_labels)
    print("KERNEL_OK")
</pallas_src>

<mosaic_0001>
module attributes {stable_mosaic.version = 11 : i64} {
  func.func @_gdamf_fused_kernel(%arg0: i32, %arg1: memref<8x128xf32, #tpu.memory_space<vmem>>, %arg2: memref<128x128xf32, #tpu.memory_space<vmem>>, %arg3: memref<128x128xf32, #tpu.memory_space<vmem>>, %arg4: memref<8x128xf32, #tpu.memory_space<vmem>>, %arg5: memref<2x128x128xf32, #tpu.memory_space<vmem>>, %arg6: memref<2x128x128xf32, #tpu.memory_space<vmem>>, %arg7: memref<2x128x128xf32, #tpu.memory_space<vmem>>, %arg8: memref<2x8x128xf32, #tpu.memory_space<vmem>>, %arg9: memref<8x128xf32, #tpu.memory_space<vmem>>, %arg10: memref<8x128xf32, #tpu.memory_space<vmem>>) attributes {dimension_semantics = [#tpu.dimension_semantics<parallel>], iteration_bounds = array<i64: 1>, scalar_prefetch = 0 : i64, scratch_operands = 0 : i64, tpu.core_type = #tpu.core_type<tc>, window_params = [{transform_indices = @transform_0, window_bounds = array<i64: 8, 128>}, {pipeline_mode = #tpu.pipeline_mode<synchronous>, transform_indices = @transform_1, window_bounds = array<i64: 128, 128>}, {pipeline_mode = #tpu.pipeline_mode<synchronous>, transform_indices = @transform_2, window_bounds = array<i64: 128, 128>}, {pipeline_mode = #tpu.pipeline_mode<synchronous>, transform_indices = @transform_3, window_bounds = array<i64: 8, 128>}, {pipeline_mode = #tpu.pipeline_mode<synchronous>, transform_indices = @transform_4, window_bounds = array<i64: 2, 128, 128>}, {pipeline_mode = #tpu.pipeline_mode<synchronous>, transform_indices = @transform_5, window_bounds = array<i64: 2, 128, 128>}, {pipeline_mode = #tpu.pipeline_mode<synchronous>, transform_indices = @transform_6, window_bounds = array<i64: 2, 128, 128>}, {pipeline_mode = #tpu.pipeline_mode<synchronous>, transform_indices = @transform_7, window_bounds = array<i64: 2, 8, 128>}, {transform_indices = @transform_8, window_bounds = array<i64: 8, 128>}, {transform_indices = @transform_9, window_bounds = array<i64: 8, 128>}]} {
    %c0 = arith.constant 0 : index
    %c0_0 = arith.constant 0 : index
    %0 = vector.load %arg4[%c0, %c0_0] : memref<8x128xf32, #tpu.memory_space<vmem>>, vector<8x128xf32>
    %c0_1 = arith.constant 0 : index
    %c0_2 = arith.constant 0 : index
    %1 = vector.load %arg1[%c0_1, %c0_2] : memref<8x128xf32, #tpu.memory_space<vmem>>, vector<8x128xf32>
    %c0_3 = arith.constant 0 : index
    %c0_4 = arith.constant 0 : index
    %2 = vector.load %arg2[%c0_3, %c0_4] : memref<128x128xf32, #tpu.memory_space<vmem>>, vector<128x128xf32>
    %cst = arith.constant dense<0.000000e+00> : vector<8x128xf32>
    %3 = tpu.matmul %1, %2, %cst {dimension_numbers = #tpu.dot_dimension_numbers<[1], [0], [0], [1], [0, 0, 1, 1], [], []>} : vector<8x128xf32>, vector<128x128xf32>, vector<8x128xf32> -> vector<8x128xf32>
    %4 = vector.extract_strided_slice %0 {offsets = [0, 0], sizes = [1, 128], strides = [1, 1]} : vector<8x128xf32> to vector<1x128xf32>
    %5 = vector.broadcast %4 : vector<1x128xf32> to vector<8x128xf32>
    %6 = arith.addf %3, %5 : vector<8x128xf32>
    %cst_5 = arith.constant 0.000000e+00 : f32
    %7 = vector.broadcast %cst_5 : f32 to vector<8x128xf32>
    %8 = arith.maximumf %6, %7 : vector<8x128xf32>
    %9 = vector.extract_strided_slice %0 {offsets = [1, 0], sizes = [1, 128], strides = [1, 1]} : vector<8x128xf32> to vector<1x128xf32>
    %10 = vector.broadcast %9 : vector<1x128xf32> to vector<8x128xf32>
    %11 = arith.mulf %8, %10 : vector<8x128xf32>
    %12 = vector.extract_strided_slice %0 {offsets = [2, 0], sizes = [1, 128], strides = [1, 1]} : vector<8x128xf32> to vector<1x128xf32>
    %13 = vector.broadcast %12 : vector<1x128xf32> to vector<8x128xf32>
    %14 = arith.addf %11, %13 : vector<8x128xf32>
    %c0_6 = arith.constant 0 : index
    %c0_7 = arith.constant 0 : index
    %15 = vector.load %arg3[%c0_6, %c0_7] : memref<128x128xf32, #tpu.memory_space<vmem>>, vector<128x128xf32>
    %cst_8 = arith.constant dense<0.000000e+00> : vector<8x128xf32>
    %16 = tpu.matmul %14, %15, %cst_8 {dimension_numbers = #tpu.dot_dimension_numbers<[1], [0], [0], [1], [0, 0, 1, 1], [], []>} : vector<8x128xf32>, vector<128x128xf32>, vector<8x128xf32> -> vector<8x128xf32>
    %17 = vector.extract_strided_slice %0 {offsets = [3, 0], sizes = [1, 128], strides = [1, 1]} : vector<8x128xf32> to vector<1x128xf32>
    %18 = vector.broadcast %17 : vector<1x128xf32> to vector<8x128xf32>
    %19 = arith.addf %16, %18 : vector<8x128xf32>
    %c0_9 = arith.constant 0 : index
    %c0_10 = arith.constant 0 : index
    %c0_11 = arith.constant 0 : index
    %20 = vector.load %arg8[%c0_9, %c0_10, %c0_11] : memref<2x8x128xf32, #tpu.memory_space<vmem>>, vector<1x8x128xf32>
    %21 = vector.shape_cast %20 : vector<1x8x128xf32> to vector<8x128xf32>
    %c0_12 = arith.constant 0 : index
    %c0_13 = arith.constant 0 : index
    %c0_14 = arith.constant 0 : index
    %22 = vector.load %arg5[%c0_12, %c0_13, %c0_14] : memref<2x128x128xf32, #tpu.memory_space<vmem>>, vector<1x128x128xf32>
    %23 = vector.shape_cast %22 : vector<1x128x128xf32> to vector<128x128xf32>
    %cst_15 = arith.constant dense<0.000000e+00> : vector<8x128xf32>
    %24 = tpu.matmul %14, %23, %cst_15 {dimension_numbers = #tpu.dot_dimension_numbers<[1], [0], [0], [1], [0, 0, 1, 1], [], []>} : vector<8x128xf32>, vector<128x128xf32>, vector<8x128xf32> -> vector<8x128xf32>
    %25 = vector.extract_strided_slice %21 {offsets = [0, 0], sizes = [1, 128], strides = [1, 1]} : vector<8x128xf32> to vector<1x128xf32>
    %26 = vector.broadcast %25 : vector<1x128xf32> to vector<8x128xf32>
    %27 = arith.addf %24, %26 : vector<8x128xf32>
    %cst_16 = arith.constant 0.000000e+00 : f32
    %28 = vector.broadcast %cst_16 : f32 to vector<8x128xf32>
    %29 = arith.maximumf %27, %28 : vector<8x128xf32>
    %30 = vector.extract_strided_slice %21 {offsets = [1, 0], sizes = [1, 128], strides = [1, 1]} : vector<8x128xf32> to vector<1x128xf32>
    %31 = vector.broadcast %30 : vector<1x128xf32> to vector<8x128xf32>
    %32 = arith.mulf %29, %31 : vector<8x128xf32>
    %33 = vector.extract_strided_slice %21 {offsets = [2, 0], sizes = [1, 128], strides = [1, 1]} : vector<8x128xf32> to vector<1x128xf32>
    %34 = vector.broadcast %33 : vector<1x128xf32> to vector<8x128xf32>
    %35 = arith.addf %32, %34 : vector<8x128xf32>
    %c0_17 = arith.constant 0 : index
    %c0_18 = arith.constant 0 : index
    %c0_19 = arith.constant 0 : index
    %36 = vector.load %arg6[%c0_17, %c0_18, %c0_19] : memref<2x128x128xf32, #tpu.memory_space<vmem>>, vector<1x128x128xf32>
    %37 = vector.shape_cast %36 : vector<1x128x128xf32> to vector<128x128xf32>
    %cst_20 = arith.constant dense<0.000000e+00> : vector<8x128xf32>
    %38 = tpu.matmul %35, %37, %cst_20 {dimension_numbers = #tpu.dot_dimension_numbers<[1], [0], [0], [1], [0, 0, 1, 1], [], []>} : vector<8x128xf32>, vector<128x128xf32>, vector<8x128xf32> -> vector<8x128xf32>
    %c0_21 = arith.constant 0 : index
    %c0_22 = arith.constant 0 : index
    %c0_23 = arith.constant 0 : index
    %39 = vector.load %arg7[%c0_21, %c0_22, %c0_23] : memref<2x128x128xf32, #tpu.memory_space<vmem>>, vector<1x128x128xf32>
    %40 = vector.shape_cast %39 : vector<1x128x128xf32> to vector<128x128xf32>
    %cst_24 = arith.constant dense<0.000000e+00> : vector<8x128xf32>
    %41 = tpu.matmul %19, %40, %cst_24 {dimension_numbers = #tpu.dot_dimension_numbers<[1], [0], [0], [1], [0, 0, 1, 1], [], []>} : vector<8x128xf32>, vector<128x128xf32>, vector<8x128xf32> -> vector<8x128xf32>
    %42 = arith.addf %38, %41 : vector<8x128xf32>
    %43 = vector.extract_strided_slice %21 {offsets = [3, 0], sizes = [1, 128], strides = [1, 1]} : vector<8x128xf32> to vector<1x128xf32>
    %44 = vector.broadcast %43 : vector<1x128xf32> to vector<8x128xf32>
    %45 = arith.addf %42, %44 : vector<8x128xf32>
    %c1 = arith.constant 1 : index
    %c0_25 = arith.constant 0 : index
    %c0_26 = arith.constant 0 : index
    %46 = vector.load %arg8[%c1, %c0_25, %c0_26] : memref<2x8x128xf32, #tpu.memory_space<vmem>>, vector<1x8x128xf32>
    %47 = vector.shape_cast %46 : vector<1x8x128xf32> to vector<8x128xf32>
    %c1_27 = arith.constant 1 : index
    %c0_28 = arith.constant 0 : index
    %c0_29 = arith.constant 0 : index
    %48 = vector.load %arg5[%c1_27, %c0_28, %c0_29] : memref<2x128x128xf32, #tpu.memory_space<vmem>>, vector<1x128x128xf32>
    %49 = vector.shape_cast %48 : vector<1x128x128xf32> to vector<128x128xf32>
    %cst_30 = arith.constant dense<0.000000e+00> : vector<8x128xf32>
    %50 = tpu.matmul %35, %49, %cst_30 {dimension_numbers = #tpu.dot_dimension_numbers<[1], [0], [0], [1], [0, 0, 1, 1], [], []>} : vector<8x128xf32>, vector<128x128xf32>, vector<8x128xf32> -> vector<8x128xf32>
    %51 = vector.extract_strided_slice %47 {offsets = [0, 0], sizes = [1, 128], strides = [1, 1]} : vector<8x128xf32> to vector<1x128xf32>
    %52 = vector.broadcast %51 : vector<1x128xf32> to vector<8x128xf32>
    %53 = arith.addf %50, %52 : vector<8x128xf32>
    %cst_31 = arith.constant 0.000000e+00 : f32
    %54 = vector.broadcast %cst_31 : f32 to vector<8x128xf32>
    %55 = arith.maximumf %53, %54 : vector<8x128xf32>
    %56 = vector.extract_strided_slice %47 {offsets = [1, 0], sizes = [1, 128], strides = [1, 1]} : vector<8x128xf32> to vector<1x128xf32>
    %57 = vector.broadcast %56 : vector<1x128xf32> to vector<8x128xf32>
    %58 = arith.mulf %55, %57 : vector<8x128xf32>
    %59 = vector.extract_strided_slice %47 {offsets = [2, 0], sizes = [1, 128], strides = [1, 1]} : vector<8x128xf32> to vector<1x128xf32>
    %60 = vector.broadcast %59 : vector<1x128xf32> to vector<8x128xf32>
    %61 = arith.addf %58, %60 : vector<8x128xf32>
    %c1_32 = arith.constant 1 : index
    %c0_33 = arith.constant 0 : index
    %c0_34 = arith.constant 0 : index
    %62 = vector.load %arg6[%c1_32, %c0_33, %c0_34] : memref<2x128x128xf32, #tpu.memory_space<vmem>>, vector<1x128x128xf32>
    %63 = vector.shape_cast %62 : vector<1x128x128xf32> to vector<128x128xf32>
    %cst_35 = arith.constant dense<0.000000e+00> : vector<8x128xf32>
    %64 = tpu.matmul %61, %63, %cst_35 {dimension_numbers = #tpu.dot_dimension_numbers<[1], [0], [0], [1], [0, 0, 1, 1], [], []>} : vector<8x128xf32>, vector<128x128xf32>, vector<8x128xf32> -> vector<8x128xf32>
    %c1_36 = arith.constant 1 : index
    %c0_37 = arith.constant 0 : index
    %c0_38 = arith.constant 0 : index
    %65 = vector.load %arg7[%c1_36, %c0_37, %c0_38] : memref<2x128x128xf32, #tpu.memory_space<vmem>>, vector<1x128x128xf32>
    %66 = vector.shape_cast %65 : vector<1x128x128xf32> to vector<128x128xf32>
    %cst_39 = arith.constant dense<0.000000e+00> : vector<8x128xf32>
    %67 = tpu.matmul %45, %66, %cst_39 {dimension_numbers = #tpu.dot_dimension_numbers<[1], [0], [0], [1], [0, 0, 1, 1], [], []>} : vector<8x128xf32>, vector<128x128xf32>, vector<8x128xf32> -> vector<8x128xf32>
    %68 = arith.addf %64, %67 : vector<8x128xf32>
    %69 = vector.extract_strided_slice %47 {offsets = [3, 0], sizes = [1, 128], strides = [1, 1]} : vector<8x128xf32> to vector<1x128xf32>
    %70 = vector.broadcast %69 : vector<1x128xf32> to vector<8x128xf32>
    %71 = arith.addf %68, %70 : vector<8x128xf32>
    %c0_40 = arith.constant 0 : index
    %c0_41 = arith.constant 0 : index
    %72 = vector.load %arg9[%c0_40, %c0_41] : memref<8x128xf32, #tpu.memory_space<vmem>>, vector<8x128xf32>
    tpu.vector_store %arg9[%c0_40, %c0_41], %61 {strides = array<i32>} : memref<8x128xf32, #tpu.memory_space<vmem>>, vector<8x128xf32>,
    %c0_42 = arith.constant 0 : index
    %c0_43 = arith.constant 0 : index
    %73 = vector.load %arg10[%c0_42, %c0_43] : memref<8x128xf32, #tpu.memory_space<vmem>>, vector<8x128xf32>
    tpu.vector_store %arg10[%c0_42, %c0_43], %71 {strides = array<i32>} : memref<8x128xf32, #tpu.memory_space<vmem>>, vector<8x128xf32>,
    return
  }
  func.func @transform_0(%arg0: i32) -> (i32, i32) {
    %c0_i32 = arith.constant 0 : i32
    %c0_i32_0 = arith.constant 0 : i32
    return %arg0, %c0_i32 : i32, i32
  }
  func.func @transform_1(%arg0: i32) -> (i32, i32) {
    %c0_i32 = arith.constant 0 : i32
    %c0_i32_0 = arith.constant 0 : i32
    %c0_i32_1 = arith.constant 0 : i32
    return %c0_i32, %c0_i32_0 : i32, i32
  }
  func.func @transform_2(%arg0: i32) -> (i32, i32) {
    %c0_i32 = arith.constant 0 : i32
    %c0_i32_0 = arith.constant 0 : i32
    %c0_i32_1 = arith.constant 0 : i32
    return %c0_i32, %c0_i32_0 : i32, i32
  }
  func.func @transform_3(%arg0: i32) -> (i32, i32) {
    %c0_i32 = arith.constant 0 : i32
    %c0_i32_0 = arith.constant 0 : i32
    %c0_i32_1 = arith.constant 0 : i32
    return %c0_i32, %c0_i32_0 : i32, i32
  }
  func.func @transform_4(%arg0: i32) -> (i32, i32, i32) {
    %c0_i32 = arith.constant 0 : i32
    %c0_i32_0 = arith.constant 0 : i32
    %c0_i32_1 = arith.constant 0 : i32
    %c0_i32_2 = arith.constant 0 : i32
    return %c0_i32, %c0_i32_0, %c0_i32_1 : i32, i32, i32
  }
  func.func @transform_5(%arg0: i32) -> (i32, i32, i32) {
    %c0_i32 = arith.constant 0 : i32
    %c0_i32_0 = arith.constant 0 : i32
    %c0_i32_1 = arith.constant 0 : i32
    %c0_i32_2 = arith.constant 0 : i32
    return %c0_i32, %c0_i32_0, %c0_i32_1 : i32, i32, i32
  }
  func.func @transform_6(%arg0: i32) -> (i32, i32, i32) {
    %c0_i32 = arith.constant 0 : i32
    %c0_i32_0 = arith.constant 0 : i32
    %c0_i32_1 = arith.constant 0 : i32
    %c0_i32_2 = arith.constant 0 : i32
    return %c0_i32, %c0_i32_0, %c0_i32_1 : i32, i32, i32
  }
  func.func @transform_7(%arg0: i32) -> (i32, i32, i32) {
    %c0_i32 = arith.constant 0 : i32
    %c0_i32_0 = arith.constant 0 : i32
    %c0_i32_1 = arith.constant 0 : i32
    %c0_i32_2 = arith.constant 0 : i32
    return %c0_i32, %c0_i32_0, %c0_i32_1 : i32, i32, i32
  }
  func.func @transform_8(%arg0: i32) -> (i32, i32) {
    %c0_i32 = arith.constant 0 : i32
    %c0_i32_0 = arith.constant 0 : i32
    return %arg0, %c0_i32 : i32, i32
  }
  func.func @transform_9(%arg0: i32) -> (i32, i32) {
    %c0_i32 = arith.constant 0 : i32
    %c0_i32_0 = arith.constant 0 : i32
    return %arg0, %c0_i32 : i32, i32
  }
}

</mosaic_0001>

<llo_original>
// kernel: gdamf_forward.1
$region0: #{gdamf_forward.1}
  #allocation0 [shape = 'u32[]', space=smem, size = 0x4, offset = 0x4, fixed_abs, tag = 'smem constant byte address 0x4 - core index']
  #allocation1 [shape = 'u32[72,128]{1,0:T(1,128)}', space=vmem, size = 0x9000, scoped, tag = 'internal scratch']
  %s0 = inlined_call_operand.vmem [shape: f32[8,128], index: 0, kind: input, shape index: {}]
  %s1 = inlined_call_operand.vmem [shape: f32[128,128], index: 1, kind: input, shape index: {}]
  %s2 = inlined_call_operand.vmem [shape: f32[128,128], index: 2, kind: input, shape index: {}]
  %s3 = inlined_call_operand.vmem [shape: f32[8,128], index: 3, kind: input, shape index: {}]
  %s4 = inlined_call_operand.vmem [shape: f32[2,128,128], index: 4, kind: input, shape index: {}]
  %s5 = inlined_call_operand.vmem [shape: f32[2,128,128], index: 5, kind: input, shape index: {}]
  %s6 = inlined_call_operand.vmem [shape: f32[2,128,128], index: 6, kind: input, shape index: {}]
  %s7 = inlined_call_operand.vmem [shape: f32[2,8,128], index: 7, kind: input, shape index: {}]
  %s8 = inlined_call_operand.hbm [shape: f32[8,128], index: 8, kind: output, shape index: {0}]
  %s9 = inlined_call_operand.vmem [shape: f32[8,128], index: 9, kind: output, shape index: {1}]
  %10 = xla_tuple %s8, %s9
  %s11 = sld [smem:[#allocation0]]
  $region50: #{gdamf_forward.1} parent=0
    _
  %s13 = ssub.s32 1, %s11
  %s14 = scalar_select 0, %s13, %s11
  $region1: #{gdamf_forward.1} parent=0
    #allocation2 [shape = 'u8[4096]{0}', space=vmem, size = 0x1000, scoped, tag = 'output window, operand 0, single buffered']
    #allocation3 [shape = 's32[1]{0}', space=sflag, size = 0x4, scoped, tag = 'scoped memory for gdamf_forward.1']
    %15 = vsyncpa [#allocation3], 0
    // Predicated region
    $region2: #{gdamf_forward.1} parent=1 // pred_check
      _
    $region3: #{gdamf_forward.1} parent=1 // pred_check_branch
      %17 = sbr.rel (0) target = $region5
    $region4: #{gdamf_forward.1} parent=1 // pred_region
      _
    $region5: #{gdamf_forward.1} parent=1 // pred_fallthru
      _
    // Predicated region
    $region6: #{gdamf_forward.1} parent=1 // pred_check
      _
    $region7: #{gdamf_forward.1} parent=1 // pred_check_branch
      %19 = sbr.rel (0) target = $region9
    $region8: #{gdamf_forward.1} parent=1 // pred_region
      _
    $region9: #{gdamf_forward.1} parent=1 // pred_fallthru
      _
    // Predicated region
    $region10: #{gdamf_forward.1} parent=1 // pred_check
      _
    $region11: #{gdamf_forward.1} parent=1 // pred_check_branch
      %21 = sbr.rel (0) target = $region13
    $region12: #{gdamf_forward.1} parent=1 // pred_region
      _
    $region13: #{gdamf_forward.1} parent=1 // pred_fallthru
      _
    // Predicated region
    $region14: #{gdamf_forward.1} parent=1 // pred_check
      _
    $region15: #{gdamf_forward.1} parent=1 // pred_check_branch
      %23 = sbr.rel (0) target = $region17
    $region16: #{gdamf_forward.1} parent=1 // pred_region
      _
    $region17: #{gdamf_forward.1} parent=1 // pred_fallthru
      _
    // Predicated region
    $region18: #{gdamf_forward.1} parent=1 // pred_check
      _
    $region19: #{gdamf_forward.1} parent=1 // pred_check_branch
      %25 = sbr.rel (0) target = $region21
    $region20: #{gdamf_forward.1} parent=1 // pred_region
      _
    $region21: #{gdamf_forward.1} parent=1 // pred_fallthru
      _
    // Predicated region
    $region22: #{gdamf_forward.1} parent=1 // pred_check
      _
    $region23: #{gdamf_forward.1} parent=1 // pred_check_branch
      %27 = sbr.rel (0) target = $region25
    $region24: #{gdamf_forward.1} parent=1 // pred_region
      _
    $region25: #{gdamf_forward.1} parent=1 // pred_fallthru
      _
    // Predicated region
    $region26: #{gdamf_forward.1} parent=1 // pred_check
      _
    $region27: #{gdamf_forward.1} parent=1 // pred_check_branch
      %29 = sbr.rel (0) target = $region29
    $region28: #{gdamf_forward.1} parent=1 // pred_region
      _
    $region29: #{gdamf_forward.1} parent=1 // pred_fallthru
      _
    // Predicated region
    $region30: #{gdamf_forward.1} parent=1 // pred_check
      _
    $region31: #{gdamf_forward.1} parent=1 // pred_check_branch
      %31 = sbr.rel (0) target = $region33
    $region32: #{gdamf_forward.1} parent=1 // pred_region
      _
    $region33: #{gdamf_forward.1} parent=1 // pred_fallthru
      _
    %v32 = vld [vmem:[%s3] sm:$0xff]
    %v33 = vld [vmem:[%s0] sm:$0xff]
    %v34 = vld [vmem:[%s1] sm:$0xff]
    %v35 = vld [vmem:[%s1 + $0x8] sm:$0xff]
    %v36 = vld [vmem:[%s1 + $0x10] sm:$0xff]
    %v37 = vld [vmem:[%s1 + $0x18] sm:$0xff]
    %v38 = vld [vmem:[%s1 + $0x20] sm:$0xff]
    %v39 = vld [vmem:[%s1 + $0x28] sm:$0xff]
    %v40 = vld [vmem:[%s1 + $0x30] sm:$0xff]
    %v41 = vld [vmem:[%s1 + $0x38] sm:$0xff]
    %v42 = vld [vmem:[%s1 + $0x40] sm:$0xff]
    %v43 = vld [vmem:[%s1 + $0x48] sm:$0xff]
    %v44 = vld [vmem:[%s1 + $0x50] sm:$0xff]
    %v45 = vld [vmem:[%s1 + $0x58] sm:$0xff]
    %v46 = vld [vmem:[%s1 + $0x60] sm:$0xff]
    %v47 = vld [vmem:[%s1 + $0x68] sm:$0xff]
    %v48 = vld [vmem:[%s1 + $0x70] sm:$0xff]
    %v49 = vld [vmem:[%s1 + $0x78] sm:$0xff]
    %v50 = vperm.slane %v32, 0
    %51 = vmatpush.msra.mxu0 %v49
    %52 = vmatpush.msra.mxu0 %v48
    %53 = vmatpush.msra.mxu0 %v47
    %54 = vmatpush.msra.mxu0 %v46
    %55 = vmatpush.msra.mxu0 %v45
    %56 = vmatpush.msra.mxu0 %v44
    %57 = vmatpush.msra.mxu0 %v43
    %58 = vmatpush.msra.mxu0 %v42
    %59 = vmatpush.msra.mxu0 %v41
    %60 = vmatpush.msra.mxu0 %v40
    %61 = vmatpush.msra.mxu0 %v39
    %62 = vmatpush.msra.mxu0 %v38
    %63 = vmatpush.msra.mxu0 %v37
    %64 = vmatpush.msra.mxu0 %v36
    %65 = vmatpush.msra.mxu0 %v35
    %66 = vmatpush.msra.mxu0 %v34
    %67 = vmatmul.f32.gmra.mxu0 %v33
    %v68 = vpop.f32.mrf.mxu0
    %v69 = vadd.f32 %v50, %v68
    %70 = vdwg.mxu0
    %v71 = vmax.f32 %v69, 0.0
    %v72 = vperm.slane %v32, 1
    %v73 = vmul.f32 %v71, %v72
    %v74 = vperm.slane %v32, 2
    %v75 = vadd.f32 %v73, %v74
    %v76 = vld [vmem:[%s2] sm:$0xff]
    %v77 = vld [vmem:[%s2 + $0x8] sm:$0xff]
    %v78 = vld [vmem:[%s2 + $0x10] sm:$0xff]
    %v79 = vld [vmem:[%s2 + $0x18] sm:$0xff]
    %v80 = vld [vmem:[%s2 + $0x20] sm:$0xff]
    %v81 = vld [vmem:[%s2 + $0x28] sm:$0xff]
    %v82 = vld [vmem:[%s2 + $0x30] sm:$0xff]
    %v83 = vld [vmem:[%s2 + $0x38] sm:$0xff]
    %v84 = vld [vmem:[%s2 + $0x40] sm:$0xff]
    %v85 = vld [vmem:[%s2 + $0x48] sm:$0xff]
    %v86 = vld [vmem:[%s2 + $0x50] sm:$0xff]
    %v87 = vld [vmem:[%s2 + $0x58] sm:$0xff]
    %v88 = vld [vmem:[%s2 + $0x60] sm:$0xff]
    %v89 = vld [vmem:[%s2 + $0x68] sm:$0xff]
    %v90 = vld [vmem:[%s2 + $0x70] sm:$0xff]
    %v91 = vld [vmem:[%s2 + $0x78] sm:$0xff]
    %v92 = vperm.slane %v32, 3
    %93 = vmatpush.msra.mxu0 %v91
    %94 = vmatpush.msra.mxu0 %v90
    %95 = vmatpush.msra.mxu0 %v89
    %96 = vmatpush.msra.mxu0 %v88
    %97 = vmatpush.msra.mxu0 %v87
    %98 = vmatpush.msra.mxu0 %v86
    %99 = vmatpush.msra.mxu0 %v85
    %100 = vmatpush.msra.mxu0 %v84
    %101 = vmatpush.msra.mxu0 %v83
    %102 = vmatpush.msra.mxu0 %v82
    %103 = vmatpush.msra.mxu0 %v81
    %104 = vmatpush.msra.mxu0 %v80
    %105 = vmatpush.msra.mxu0 %v79
    %106 = vmatpush.msra.mxu0 %v78
    %107 = vmatpush.msra.mxu0 %v77
    %108 = vmatpush.msra.mxu0 %v76
    %109 = vmatmul.f32.gmra.mxu0 %v75
    %v110 = vpop.f32.mrf.mxu0
    %v111 = vadd.f32 %v92, %v110
    %112 = vdwg.mxu0
    %v113 = vld [vmem:[%s7] sm:$0xff]
    %v114 = vld [vmem:[%s4] sm:$0xff]
    %v115 = vld [vmem:[%s4 + $0x8] sm:$0xff]
    %v116 = vld [vmem:[%s4 + $0x10] sm:$0xff]
    %v117 = vld [vmem:[%s4 + $0x18] sm:$0xff]
    %v118 = vld [vmem:[%s4 + $0x20] sm:$0xff]
    %v119 = vld [vmem:[%s4 + $0x28] sm:$0xff]
    %v120 = vld [vmem:[%s4 + $0x30] sm:$0xff]
    %v121 = vld [vmem:[%s4 + $0x38] sm:$0xff]
    %v122 = vld [vmem:[%s4 + $0x40] sm:$0xff]
    %v123 = vld [vmem:[%s4 + $0x48] sm:$0xff]
    %v124 = vld [vmem:[%s4 + $0x50] sm:$0xff]
    %v125 = vld [vmem:[%s4 + $0x58] sm:$0xff]
    %v126 = vld [vmem:[%s4 + $0x60] sm:$0xff]
    %v127 = vld [vmem:[%s4 + $0x68] sm:$0xff]
    %v128 = vld [vmem:[%s4 + $0x70] sm:$0xff]
    %v129 = vld [vmem:[%s4 + $0x78] sm:$0xff]
    %v130 = vperm.slane %v113, 0
    %131 = vmatpush.msra.mxu0 %v129
    %132 = vmatpush.msra.mxu0 %v128
    %133 = vmatpush.msra.mxu0 %v127
    %134 = vmatpush.msra.mxu0 %v126
    %135 = vmatpush.msra.mxu0 %v125
    %136 = vmatpush.msra.mxu0 %v124
    %137 = vmatpush.msra.mxu0 %v123
    %138 = vmatpush.msra.mxu0 %v122
    %139 = vmatpush.msra.mxu0 %v121
    %140 = vmatpush.msra.mxu0 %v120
    %141 = vmatpush.msra.mxu0 %v119
    %142 = vmatpush.msra.mxu0 %v118
    %143 = vmatpush.msra.mxu0 %v117
    %144 = vmatpush.msra.mxu0 %v116
    %145 = vmatpush.msra.mxu0 %v115
    %146 = vmatpush.msra.mxu0 %v114
    %147 = vmatmul.f32.gmra.mxu0 %v75
    %v148 = vpop.f32.mrf.mxu0
    %v149 = vadd.f32 %v130, %v148
    %150 = vdwg.mxu0
    %v151 = vmax.f32 %v149, 0.0
    %v152 = vperm.slane %v113, 1
    %v153 = vmul.f32 %v151, %v152
    %v154 = vperm.slane %v113, 2
    %v155 = vadd.f32 %v153, %v154
    %v156 = vld [vmem:[%s5] sm:$0xff]
    %v157 = vld [vmem:[%s5 + $0x8] sm:$0xff]
    %v158 = vld [vmem:[%s5 + $0x10] sm:$0xff]
    %v159 = vld [vmem:[%s5 + $0x18] sm:$0xff]
    %v160 = vld [vmem:[%s5 + $0x20] sm:$0xff]
    %v161 = vld [vmem:[%s5 + $0x28] sm:$0xff]
    %v162 = vld [vmem:[%s5 + $0x30] sm:$0xff]
    %v163 = vld [vmem:[%s5 + $0x38] sm:$0xff]
    %v164 = vld [vmem:[%s5 + $0x40] sm:$0xff]
    %v165 = vld [vmem:[%s5 + $0x48] sm:$0xff]
    %v166 = vld [vmem:[%s5 + $0x50] sm:$0xff]
    %v167 = vld [vmem:[%s5 + $0x58] sm:$0xff]
    %v168 = vld [vmem:[%s5 + $0x60] sm:$0xff]
    %v169 = vld [vmem:[%s5 + $0x68] sm:$0xff]
    %v170 = vld [vmem:[%s5 + $0x70] sm:$0xff]
    %v171 = vld [vmem:[%s5 + $0x78] sm:$0xff]
    %v172 = vld [vmem:[%s6] sm:$0xff]
    %v173 = vld [vmem:[%s6 + $0x8] sm:$0xff]
    %v174 = vld [vmem:[%s6 + $0x10] sm:$0xff]
    %v175 = vld [vmem:[%s6 + $0x18] sm:$0xff]
    %v176 = vld [vmem:[%s6 + $0x20] sm:$0xff]
    %v177 = vld [vmem:[%s6 + $0x28] sm:$0xff]
    %v178 = vld [vmem:[%s6 + $0x30] sm:$0xff]
    %v179 = vld [vmem:[%s6 + $0x38] sm:$0xff]
    %v180 = vld [vmem:[%s6 + $0x40] sm:$0xff]
    %v181 = vld [vmem:[%s6 + $0x48] sm:$0xff]
    %v182 = vld [vmem:[%s6 + $0x50] sm:$0xff]
    %v183 = vld [vmem:[%s6 + $0x58] sm:$0xff]
    %v184 = vld [vmem:[%s6 + $0x60] sm:$0xff]
    %v185 = vld [vmem:[%s6 + $0x68] sm:$0xff]
    %v186 = vld [vmem:[%s6 + $0x70] sm:$0xff]
    %v187 = vld [vmem:[%s6 + $0x78] sm:$0xff]
    %188 = vmatpush.msra.mxu0 %v187
    %189 = vmatpush.msra.mxu0 %v186
    %190 = vmatpush.msra.mxu0 %v185
    %191 = vmatpush.msra.mxu0 %v184
    %192 = vmatpush.msra.mxu0 %v183
    %193 = vmatpush.msra.mxu0 %v182
    %194 = vmatpush.msra.mxu0 %v181
    %195 = vmatpush.msra.mxu0 %v180
    %196 = vmatpush.msra.mxu0 %v179
    %197 = vmatpush.msra.mxu0 %v178
    %198 = vmatpush.msra.mxu0 %v177
    %199 = vmatpush.msra.mxu0 %v176
    %200 = vmatpush.msra.mxu0 %v175
    %201 = vmatpush.msra.mxu0 %v174
    %202 = vmatpush.msra.mxu0 %v173
    %203 = vmatpush.msra.mxu0 %v172
    %204 = vmatmul.f32.gmra.mxu0 %v111
    %v205 = vpop.f32.mrf.mxu0
    %v206 = vadd.f32 0.0, %v205
    %207 = vdwg.mxu0
    %208 = vmatpush.msra.mxu0 %v171
    %209 = vmatpush.msra.mxu0 %v170
    %210 = vmatpush.msra.mxu0 %v169
    %211 = vmatpush.msra.mxu0 %v168
    %212 = vmatpush.msra.mxu0 %v167
    %213 = vmatpush.msra.mxu0 %v166
    %214 = vmatpush.msra.mxu0 %v165
    %215 = vmatpush.msra.mxu0 %v164
    %216 = vmatpush.msra.mxu0 %v163
    %217 = vmatpush.msra.mxu0 %v162
    %218 = vmatpush.msra.mxu0 %v161
    %219 = vmatpush.msra.mxu0 %v160
    %220 = vmatpush.msra.mxu0 %v159
    %221 = vmatpush.msra.mxu0 %v158
    %222 = vmatpush.msra.mxu0 %v157
    %223 = vmatpush.msra.mxu0 %v156
    %224 = vmatmul.f32.gmra.mxu0 %v155
    %v225 = vpop.f32.mrf.mxu0
    %v226 = vadd.f32 %v206, %v225
    %227 = vdwg.mxu0
    %v228 = vperm.slane %v113, 3
    %v229 = vadd.f32 %v226, %v228
    %s230 = scalar_lea.vmem %s7, 8
    %v231 = vld [vmem:[%s230] sm:$0xff]
    %s232 = scalar_lea.vmem %s4, 128
    %v233 = vld [vmem:[%s232] sm:$0xff]
    %v234 = vld [vmem:[%s232 + $0x8] sm:$0xff]
    %v235 = vld [vmem:[%s232 + $0x10] sm:$0xff]
    %v236 = vld [vmem:[%s232 + $0x18] sm:$0xff]
    %v237 = vld [vmem:[%s232 + $0x20] sm:$0xff]
    %v238 = vld [vmem:[%s232 + $0x28] sm:$0xff]
    %v239 = vld [vmem:[%s232 + $0x30] sm:$0xff]
    %v240 = vld [vmem:[%s232 + $0x38] sm:$0xff]
    %v241 = vld [vmem:[%s232 + $0x40] sm:$0xff]
    %v242 = vld [vmem:[%s232 + $0x48] sm:$0xff]
    %v243 = vld [vmem:[%s232 + $0x50] sm:$0xff]
    %v244 = vld [vmem:[%s232 + $0x58] sm:$0xff]
    %v245 = vld [vmem:[%s232 + $0x60] sm:$0xff]
    %v246 = vld [vmem:[%s232 + $0x68] sm:$0xff]
    %v247 = vld [vmem:[%s232 + $0x70] sm:$0xff]
    %v248 = vld [vmem:[%s232 + $0x78] sm:$0xff]
    %v249 = vperm.slane %v231, 0
    %250 = vmatpush.msra.mxu0 %v248
    %251 = vmatpush.msra.mxu0 %v247
    %252 = vmatpush.msra.mxu0 %v246
    %253 = vmatpush.msra.mxu0 %v245
    %254 = vmatpush.msra.mxu0 %v244
    %255 = vmatpush.msra.mxu0 %v243
    %256 = vmatpush.msra.mxu0 %v242
    %257 = vmatpush.msra.mxu0 %v241
    %258 = vmatpush.msra.mxu0 %v240
    %259 = vmatpush.msra.mxu0 %v239
    %260 = vmatpush.msra.mxu0 %v238
    %261 = vmatpush.msra.mxu0 %v237
    %262 = vmatpush.msra.mxu0 %v236
    %263 = vmatpush.msra.mxu0 %v235
    %264 = vmatpush.msra.mxu0 %v234
    %265 = vmatpush.msra.mxu0 %v233
    %266 = vmatmul.f32.gmra.mxu0 %v155
    %v267 = vpop.f32.mrf.mxu0
    %v268 = vadd.f32 %v249, %v267
    %269 = vdwg.mxu0
    %v270 = vmax.f32 %v268, 0.0
    %v271 = vperm.slane %v231, 1
    %v272 = vmul.f32 %v270, %v271
    %v273 = vperm.slane %v231, 2
    %v274 = vadd.f32 %v272, %v273
    %s275 = scalar_lea.vmem %s5, 128
    %v276 = vld [vmem:[%s275] sm:$0xff]
    %v277 = vld [vmem:[%s275 + $0x8] sm:$0xff]
    %v278 = vld [vmem:[%s275 + $0x10] sm:$0xff]
    %v279 = vld [vmem:[%s275 + $0x18] sm:$0xff]
    %v280 = vld [vmem:[%s275 + $0x20] sm:$0xff]
    %v281 = vld [vmem:[%s275 + $0x28] sm:$0xff]
    %v282 = vld [vmem:[%s275 + $0x30] sm:$0xff]
    %v283 = vld [vmem:[%s275 + $0x38] sm:$0xff]
    %v284 = vld [vmem:[%s275 + $0x40] sm:$0xff]
    %v285 = vld [vmem:[%s275 + $0x48] sm:$0xff]
    %v286 = vld [vmem:[%s275 + $0x50] sm:$0xff]
    %v287 = vld [vmem:[%s275 + $0x58] sm:$0xff]
    %v288 = vld [vmem:[%s275 + $0x60] sm:$0xff]
    %v289 = vld [vmem:[%s275 + $0x68] sm:$0xff]
    %v290 = vld [vmem:[%s275 + $0x70] sm:$0xff]
    %v291 = vld [vmem:[%s275 + $0x78] sm:$0xff]
    %s292 = scalar_lea.vmem %s6, 128
    %v293 = vld [vmem:[%s292] sm:$0xff]
    %v294 = vld [vmem:[%s292 + $0x8] sm:$0xff]
    %v295 = vld [vmem:[%s292 + $0x10] sm:$0xff]
    %v296 = vld [vmem:[%s292 + $0x18] sm:$0xff]
    %v297 = vld [vmem:[%s292 + $0x20] sm:$0xff]
    %v298 = vld [vmem:[%s292 + $0x28] sm:$0xff]
    %v299 = vld [vmem:[%s292 + $0x30] sm:$0xff]
    %v300 = vld [vmem:[%s292 + $0x38] sm:$0xff]
    %v301 = vld [vmem:[%s292 + $0x40] sm:$0xff]
    %v302 = vld [vmem:[%s292 + $0x48] sm:$0xff]
    %v303 = vld [vmem:[%s292 + $0x50] sm:$0xff]
    %v304 = vld [vmem:[%s292 + $0x58] sm:$0xff]
    %v305 = vld [vmem:[%s292 + $0x60] sm:$0xff]
    %v306 = vld [vmem:[%s292 + $0x68] sm:$0xff]
    %v307 = vld [vmem:[%s292 + $0x70] sm:$0xff]
    %v308 = vld [vmem:[%s292 + $0x78] sm:$0xff]
    %309 = vmatpush.msra.mxu0 %v308
    %310 = vmatpush.msra.mxu0 %v307
    %311 = vmatpush.msra.mxu0 %v306
    %312 = vmatpush.msra.mxu0 %v305
    %313 = vmatpush.msra.mxu0 %v304
    %314 = vmatpush.msra.mxu0 %v303
    %315 = vmatpush.msra.mxu0 %v302
    %316 = vmatpush.msra.mxu0 %v301
    %317 = vmatpush.msra.mxu0 %v300
    %318 = vmatpush.msra.mxu0 %v299
    %319 = vmatpush.msra.mxu0 %v298
    %320 = vmatpush.msra.mxu0 %v297
    %321 = vmatpush.msra.mxu0 %v296
    %322 = vmatpush.msra.mxu0 %v295
    %323 = vmatpush.msra.mxu0 %v294
    %324 = vmatpush.msra.mxu0 %v293
    %325 = vmatmul.f32.gmra.mxu0 %v229
    %v326 = vpop.f32.mrf.mxu0
    %v327 = vadd.f32 0.0, %v326
    %328 = vdwg.mxu0
    %329 = vmatpush.msra.mxu0 %v291
    %330 = vmatpush.msra.mxu0 %v290
    %331 = vmatpush.msra.mxu0 %v289
    %332 = vmatpush.msra.mxu0 %v288
    %333 = vmatpush.msra.mxu0 %v287
    %334 = vmatpush.msra.mxu0 %v286
    %335 = vmatpush.msra.mxu0 %v285
    %336 = vmatpush.msra.mxu0 %v284
    %337 = vmatpush.msra.mxu0 %v283
    %338 = vmatpush.msra.mxu0 %v282
    %339 = vmatpush.msra.mxu0 %v281
    %340 = vmatpush.msra.mxu0 %v280
    %341 = vmatpush.msra.mxu0 %v279
    %342 = vmatpush.msra.mxu0 %v278
    %343 = vmatpush.msra.mxu0 %v277
    %344 = vmatpush.msra.mxu0 %v276
    %345 = vmatmul.f32.gmra.mxu0 %v274
    %v346 = vpop.f32.mrf.mxu0
    %v347 = vadd.f32 %v327, %v346
    %348 = vdwg.mxu0
    %v349 = vperm.slane %v231, 3
    %v350 = vadd.f32 %v347, %v349
    %351 = vst [vmem:[#allocation2] sm:$0xff] %v274
    %352 = vst [vmem:[%s9] sm:$0xff] %v350
    // Predicated region
    $region34: #{gdamf_forward.1} parent=1 // pred_check
      _
    $region35: #{gdamf_forward.1} parent=1 // pred_check_branch
      %354 = sbr.rel (0) target = $region37
    $region36: #{gdamf_forward.1} parent=1 // pred_region
      %356 = vsyncadd [#allocation3], 0
      %s358 = sshll.u32 [#allocation2], 4
      %s359 = int_to_ptr.vmem [resolvable:$true] %s358
      %s360 = sshll.u32 %s8, 4
      %s361 = int_to_ptr.hbm [resolvable:$true] %s360
      %363 = dma.vmem_to_hbm [thread:$0]  %s359, 128, %s361, [#allocation3]
    $region37: #{gdamf_forward.1} parent=1 // pred_fallthru
      _
    // Predicated region
    $region38: #{gdamf_forward.1} parent=1 // pred_check
      _
    $region39: #{gdamf_forward.1} parent=1 // pred_check_branch
      %365 = sbr.rel (0) target = $region41
    $region40: #{gdamf_forward.1} parent=1 // pred_region
      _
    $region41: #{gdamf_forward.1} parent=1 // pred_fallthru
      _
    // Predicated region
    $region42: #{gdamf_forward.1} parent=1 // pred_check
      _
    $region43: #{gdamf_forward.1} parent=1 // pred_check_branch
      %367 = sbr.rel (0) target = $region45
    $region44: #{gdamf_forward.1} parent=1 // pred_region
      %369 = dma.done [#allocation3], 128
    $region45: #{gdamf_forward.1} parent=1 // pred_fallthru
      _
    // Predicated region
    $region46: #{gdamf_forward.1} parent=1 // pred_check
      _
    $region47: #{gdamf_forward.1} parent=1 // pred_check_branch
      %371 = sbr.rel (0) target = $region49
    $region48: #{gdamf_forward.1} parent=1 // pred_region
      _
    $region49: #{gdamf_forward.1} parent=1 // pred_fallthru
      _
    %372 = vsyncpa [#allocation3], 1

</llo_original>
